<compile_context>
chip_gen: v5e
topology: v5e:2x2
jax: 0.10.0
libtpu: 0.0.40
codegen_flags: <defaults>
</compile_context>

<pallas_src>
import functools
import math

import jax
import jax.numpy as jnp
from jax.experimental import pallas as pl
from jax.experimental.pallas import tpu as pltpu

_LANES = 128
_SUBLANES = 8


def _num_tensorcores():
    """2 TensorCores per chip on v7x, 1 on v5e/v6e (and as a safe default)."""
    try:
        kind = jax.devices()[0].device_kind.lower()
    except Exception:
        return 1
    return 2 if "v7" in kind else 1


def _vmem_capacity_bytes():
    try:
        return int(pltpu.get_tpu_info().vmem_capacity_bytes)
    except Exception:
        return 64 * 1024 * 1024     # conservative (v7x per-TC capacity)


def get_tsa_threshold(schedule, global_step, num_train_steps, start, end):
    training_progress = global_step / num_train_steps
    if schedule == 'linear_schedule':
        threshold = training_progress
    elif schedule == 'exp_schedule':
        threshold = math.exp((training_progress - 1) * 5)
    elif schedule == 'log_schedule':
        threshold = 1 - math.exp(-training_progress * 5)
    else:
        raise ValueError('tsa_schedule config illegal')
    return threshold * (end - start) + start


def _uda_loss_kernel(sup_ref, lbl_ref, tgt_ref, prd_ref, part_ref, *,
                     tile_r, tiles_per_core, n_sup_tiles, n_unsup_tiles,
                     sup_size, unsup_size, tsa_threshold):
    c = pl.program_id(0)            # core split ("parallel")
    i = pl.program_id(1)            # row-tile sweep ("arbitrary", reduction axis)
    t = c * tiles_per_core + i      # global row-tile index (unclamped)

    # Zero this core's resident partial-sum block at the start of its sweep.
    @pl.when(i == 0)
    def _():
        part_ref[...] = jnp.zeros_like(part_ref)

    lane = jax.lax.broadcasted_iota(jnp.int32, part_ref.shape, 1)
    # Row ids of this tile, relative to the start of each branch (unclamped t).
    row = jax.lax.broadcasted_iota(jnp.int32, (tile_r, 1), 0) + t * tile_r

    # ---------------- supervised cross entropy (optional TSA row mask) ----------------
    @pl.when(t < n_sup_tiles)
    def _():
        sup_valid = row < sup_size                                        # (T,1)
        ls = sup_ref[...].astype(jnp.float32)                             # (T,C)
        z = ls - jnp.max(ls, axis=-1, keepdims=True)
        lse = jnp.log(jnp.sum(jnp.exp(z), axis=-1, keepdims=True))        # (T,1)
        col = jax.lax.broadcasted_iota(jnp.int32, z.shape, 1)
        # z at the label column (no full log_softmax / float one-hot materialized).
        z_lbl = jnp.sum(jnp.where(col == lbl_ref[...], z, 0.0),
                        axis=-1, keepdims=True)
        nll = lse - z_lbl                                                 # (T,1)
        if tsa_threshold is None:
            selw = jnp.where(sup_valid, 1.0, 0.0)
        else:
            p_true = jnp.exp(z_lbl - lse)                                 # softmax prob at label
            sel = jnp.logical_and(sup_valid, p_true < tsa_threshold)      # strict '<' like .lt()
            selw = jnp.where(sel, 1.0, 0.0)
        s_nll = jnp.sum(selw * nll)
        s_cnt = jnp.sum(selw)
        part_ref[...] += jnp.where(lane == 0, s_nll,
                         jnp.where(lane == 1, s_cnt, 0.0))

    # ---------------- unsupervised KL (sum here; /unsup in the wrapper) ----------------
    @pl.when(t < n_unsup_tiles)
    def _():
        unsup_valid = row < unsup_size
        lt = tgt_ref[...].astype(jnp.float32)
        zt = lt - jnp.max(lt, axis=-1, keepdims=True)
        et = jnp.exp(zt)                                                  # single exp pass, reused
        st = jnp.sum(et, axis=-1, keepdims=True)                          # (T,1)
        p_t = et * (1.0 / st)                                             # softmax(target)

        lp = prd_ref[...].astype(jnp.float32)
        zp = lp - jnp.max(lp, axis=-1, keepdims=True)
        sq = jnp.sum(jnp.exp(zp), axis=-1, keepdims=True)                 # (T,1)

        # KL row = sum p*(log p - log q) = sum p*(zt - zp) + log(sq) - log(st)
        # (uses sum(p)=1; avoids materializing full-tile log_softmax temporaries).
        kl_row = (jnp.sum(p_t * (zt - zp), axis=-1, keepdims=True)
                  + jnp.log(sq) - jnp.log(st))                            # (T,1)
        s_kl = jnp.sum(jnp.where(unsup_valid, kl_row, 0.0))
        part_ref[...] += jnp.where(lane == 2, s_kl, 0.0)


def _choose_tile_rows(sup, unsup, num_classes, itemsize, row_align, budget_bytes):
    """Pick a row-tile size under a VMEM budget that includes pipeline buffers and the
    live f32 elementwise intermediates. The no-copy fast path (tile_r | gcd(sup, unsup))
    is taken only when its tile is big enough to keep the DMA pipeline efficient."""
    # 3 logit streams x 2 pipeline buffers (input dtype) + ~6 live f32 (T,C) temporaries
    # (casts, shifted logits, exps, p_t, ...) + small (T,1)->128-lane padded vectors.
    per_row = 3 * 2 * num_classes * itemsize + 6 * num_classes * 4 + 4 * _LANES
    cap = max(row_align, (budget_bytes // per_row) // row_align * row_align)
    cap = min(cap, 4096)

    g = math.gcd(sup, unsup)
    best = 0
    if g % row_align == 0:
        for cand in range(min(cap, g), row_align - 1, -row_align):
            if g % cand == 0:
                best = cand
                break
    # Accept the no-copy path only if its block is reasonably large (>= ~256 KiB) or it
    # already covers a whole branch; tiny tiles fall far below the HBM roofline and are
    # worse than one extra padded-copy HBM pass.
    if best and (best * num_classes * itemsize >= 256 * 1024
                 or best >= min(cap, max(sup, unsup))):
        return best, True

    rows_needed = max(sup, unsup)
    tile = min(cap, -(-rows_needed // row_align) * row_align)
    return max(tile, row_align), False


def uda_loss(y_pred, y_true_sup, global_step, total_steps, *,
             tsa_schedule=None, start_p=0.0, end_p=1.0, return_all_loss=True):
    sup = int(y_true_sup.shape[0])
    unsup = (int(y_pred.shape[0]) - sup) // 2
    num_classes = int(y_pred.shape[1])
    itemsize = jnp.dtype(y_pred.dtype).itemsize
    row_align = 16 if itemsize < 4 else 8        # bf16 sublane packing

    if tsa_schedule is None:
        tsa_threshold = None                     # plain mean CE, no extra exp/compare
    else:
        tsa_threshold = float(get_tsa_threshold(
            tsa_schedule, global_step, total_steps, start_p, end_p))

    num_cores = _num_tensorcores()
    vmem_cap = _vmem_capacity_bytes()
    vmem_limit = min((vmem_cap * 3) // 4, 96 * 1024 * 1024)     # 48 MiB on v7x, 96 MiB on v5e/v6e
    budget = max(4 * 1024 * 1024, vmem_limit - 6 * 1024 * 1024)  # headroom for output/labels/misc

    tile_r, aligned = _choose_tile_rows(sup, unsup, num_classes, itemsize, row_align, budget)
    n_sup_tiles = -(-sup // tile_r)
    n_unsup_tiles = -(-unsup // tile_r)
    n_tiles = max(n_sup_tiles, n_unsup_tiles)
    tiles_per_core = -(-n_tiles // num_cores)

    # Labels, padded to whole tiles (tiny; padded rows are masked by sup_valid).
    lbl = y_true_sup.astype(jnp.int32).reshape(sup, 1)
    lbl_rows = n_sup_tiles * tile_r
    if lbl_rows > sup:
        lbl = jnp.pad(lbl, ((0, lbl_rows - sup), (0, 0)))

    if aligned:
        # Fast path: no slicing/copying of y_pred.  The same HBM buffer is passed
        # three times; each branch's BlockSpec starts at a static row-block offset.
        sup_arr = tgt_arr = prd_arr = y_pred
        sup_off = 0
        tgt_off = sup // tile_r
        prd_off = (sup + unsup) // tile_r
    else:
        # Padded-copy path (row counts not tile-aligned): one extra HBM pass, big tiles.
        def _pad_rows(x, rows):
            return jnp.pad(x, ((0, rows - x.shape[0]), (0, 0))) if rows > x.shape[0] else x
        sup_arr = _pad_rows(y_pred[:sup], n_sup_tiles * tile_r)
        tgt_arr = _pad_rows(y_pred[sup:sup + unsup], n_unsup_tiles * tile_r)
        prd_arr = _pad_rows(y_pred[sup + unsup:], n_unsup_tiles * tile_r)
        sup_off = tgt_off = prd_off = 0

    def _sup_map(c, i):
        t = c * tiles_per_core + i
        return (sup_off + jnp.minimum(t, n_sup_tiles - 1), 0)

    def _lbl_map(c, i):
        t = c * tiles_per_core + i
        return (jnp.minimum(t, n_sup_tiles - 1), 0)

    def _tgt_map(c, i):
        t = c * tiles_per_core + i
        return (tgt_off + jnp.minimum(t, n_unsup_tiles - 1), 0)

    def _prd_map(c, i):
        t = c * tiles_per_core + i
        return (prd_off + jnp.minimum(t, n_unsup_tiles - 1), 0)

    kernel = functools.partial(
        _uda_loss_kernel, tile_r=tile_r, tiles_per_core=tiles_per_core,
        n_sup_tiles=n_sup_tiles, n_unsup_tiles=n_unsup_tiles,
        sup_size=sup, unsup_size=unsup, tsa_threshold=tsa_threshold)

    total_rows = sup + 2 * unsup
    cost = pl.CostEstimate(
        flops=int(10 * total_rows * num_classes),
        transcendentals=int(total_rows * num_classes),
        bytes_accessed=int(total_rows * num_classes * itemsize + sup * 4
                           + num_cores * _SUBLANES * _LANES * 4))

    partials = pl.pallas_call(
        kernel,
        out_shape=jax.ShapeDtypeStruct((num_cores * _SUBLANES, _LANES), jnp.float32),
        grid_spec=pltpu.PrefetchScalarGridSpec(
            num_scalar_prefetch=0,
            grid=(num_cores, tiles_per_core),
            in_specs=[
                pl.BlockSpec((tile_r, num_classes), _sup_map),       # supervised logits
                pl.BlockSpec((tile_r, 1), _lbl_map),                 # labels
                pl.BlockSpec((tile_r, num_classes), _tgt_map),       # unsup target logits
                pl.BlockSpec((tile_r, num_classes), _prd_map),       # unsup predicted logits
            ],
            out_specs=pl.BlockSpec((_SUBLANES, _LANES), lambda c, i: (c, 0)),
        ),
        compiler_params=pltpu.CompilerParams(
            dimension_semantics=("parallel", "arbitrary"),
            vmem_limit_bytes=int(vmem_limit)),
        cost_estimate=cost,
    )(sup_arr, lbl, tgt_arr, prd_arr)

    # Reduce the per-core partial sums and finalize the losses (tiny XLA epilogue).
    per_core = partials.reshape(num_cores, _SUBLANES, _LANES)[:, 0, :]
    sums = jnp.sum(per_core, axis=0)
    s_nll, n_sel, s_kl = sums[0], sums[1], sums[2]

    # Matches torch: loss_sup = 0 when no rows pass the TSA selection.
    loss_sup = jnp.where(n_sel > 0.0, s_nll / jnp.maximum(n_sel, 1.0), 0.0)
    loss_unsup = s_kl / unsup                       # KLDivLoss reduction='batchmean'
    total = loss_sup + loss_unsup
    if return_all_loss:
        return total, loss_sup, loss_unsup
    return total


def _reference_uda(y_pred, y_true_sup):
    """Pure-JAX reference (tsa_schedule=None path) for correctness checks."""
    sup = y_true_sup.shape[0]
    unsup = (y_pred.shape[0] - sup) // 2
    logp = jax.nn.log_softmax(y_pred[:sup].astype(jnp.float32), axis=-1)
    loss_sup = -jnp.mean(jnp.take_along_axis(logp, y_true_sup[:, None], axis=1))
    p_t = jax.nn.softmax(y_pred[sup:sup + unsup].astype(jnp.float32), axis=-1)
    logq = jax.nn.log_softmax(y_pred[sup + unsup:].astype(jnp.float32), axis=-1)
    loss_unsup = jnp.sum(p_t * (jnp.log(p_t) - logq)) / unsup
    return loss_sup + loss_unsup, loss_sup, loss_unsup


if __name__ == "__main__":
    key = jax.random.PRNGKey(0)
    k1, k2, k3, k4 = jax.random.split(key, 4)

    # Aligned shapes -> fast (no-copy, tiled) path.
    sup_size, unsup_size, num_classes = 8, 8, 128
    batch = sup_size + 2 * unsup_size                     # 24
    y_pred = jax.random.normal(k1, (batch, num_classes), dtype=jnp.float32)
    y_true = jax.random.randint(k2, (sup_size,), 0, num_classes, dtype=jnp.int32)

    total, loss_sup, loss_unsup = uda_loss(y_pred, y_true, global_step=10, total_steps=100)
    jax.block_until_ready((total, loss_sup, loss_unsup))
    ref_total, ref_sup, ref_unsup = _reference_uda(y_pred, y_true)
    assert abs(float(total) - float(ref_total)) < 1e-4
    assert abs(float(loss_sup) - float(ref_sup)) < 1e-4
    assert abs(float(loss_unsup) - float(ref_unsup)) < 1e-4

    # Exercise the TSA branch once (statically-baked threshold, row-masked CE).
    tsa_out = uda_loss(y_pred, y_true, global_step=10, total_steps=100,
                       tsa_schedule='linear_schedule')
    jax.block_until_ready(tsa_out)

    # Unaligned shapes -> padded-copy path with a single large tile, still correct.
    sup2, unsup2, c2 = 4, 2, 16
    y_pred2 = jax.random.normal(k3, (sup2 + 2 * unsup2, c2), dtype=jnp.float32)
    y_true2 = jax.random.randint(k4, (sup2,), 0, c2, dtype=jnp.int32)
    out2 = uda_loss(y_pred2, y_true2, global_step=10, total_steps=100)
    jax.block_until_ready(out2)
    ref2 = _reference_uda(y_pred2, y_true2)
    assert abs(float(out2[0]) - float(ref2[0])) < 1e-4

    print("KERNEL_OK")
</pallas_src>

<mosaic_0001>
module attributes {stable_mosaic.version = 11 : i64} {
  func.func @_uda_loss_kernel(%arg0: i32, %arg1: i32, %arg2: memref<8x128xf32, #tpu.memory_space<vmem>>, %arg3: memref<8x1xi32, #tpu.memory_space<vmem>>, %arg4: memref<8x128xf32, #tpu.memory_space<vmem>>, %arg5: memref<8x128xf32, #tpu.memory_space<vmem>>, %arg6: memref<8x128xf32, #tpu.memory_space<vmem>>) attributes {dimension_semantics = [#tpu.dimension_semantics<parallel>, #tpu.dimension_semantics<arbitrary>], iteration_bounds = array<i64: 1, 1>, scalar_prefetch = 0 : i64, scratch_operands = 0 : i64, tpu.core_type = #tpu.core_type<tc>, window_params = [{transform_indices = @transform_0, window_bounds = array<i64: 8, 128>}, {transform_indices = @transform_1, window_bounds = array<i64: 8, 1>}, {transform_indices = @transform_2, window_bounds = array<i64: 8, 128>}, {transform_indices = @transform_3, window_bounds = array<i64: 8, 128>}, {transform_indices = @transform_4, window_bounds = array<i64: 8, 128>}]} {
    %c1_i32 = arith.constant 1 : i32
    %0 = arith.muli %arg0, %c1_i32 : i32
    %1 = arith.addi %0, %arg1 : i32
    %c0_i32 = arith.constant 0 : i32
    %2 = arith.cmpi eq, %arg1, %c0_i32 : i32
    %3 = arith.extui %2 : i1 to i32
    %c0_i32_0 = arith.constant 0 : i32
    %4 = arith.cmpi ne, %3, %c0_i32_0 : i32
    scf.if %4 {
      %cst = arith.constant 0.000000e+00 : f32
      %16 = vector.broadcast %cst : f32 to vector<8x128xf32>
      %c0 = arith.constant 0 : index
      %c0_5 = arith.constant 0 : index
      %17 = vector.load %arg6[%c0, %c0_5] : memref<8x128xf32, #tpu.memory_space<vmem>>, vector<8x128xf32>
      tpu.vector_store %arg6[%c0, %c0_5], %16 {strides = array<i32>} : memref<8x128xf32, #tpu.memory_space<vmem>>, vector<8x128xf32>,
    } else {
    }
    %5 = tpu.iota {dimensions = array<i32: 1>} : vector<8x128xi32>
    %6 = tpu.iota {dimensions = array<i32: 0>} : vector<8x1xi32>
    %c8_i32 = arith.constant 8 : i32
    %7 = arith.muli %1, %c8_i32 : i32
    %8 = vector.broadcast %7 : i32 to vector<8x1xi32>
    %9 = arith.addi %6, %8 : vector<8x1xi32>
    %c1_i32_1 = arith.constant 1 : i32
    %10 = arith.cmpi slt, %1, %c1_i32_1 : i32
    %11 = arith.extui %10 : i1 to i32
    %c0_i32_2 = arith.constant 0 : i32
    %12 = arith.cmpi ne, %11, %c0_i32_2 : i32
    scf.if %12 {
      %c8_i32_5 = arith.constant 8 : i32
      %16 = vector.broadcast %c8_i32_5 : i32 to vector<8x1xi32>
      %17 = arith.cmpi slt, %9, %16 : vector<8x1xi32>
      %c0 = arith.constant 0 : index
      %c0_6 = arith.constant 0 : index
      %18 = vector.load %arg2[%c0, %c0_6] : memref<8x128xf32, #tpu.memory_space<vmem>>, vector<8x128xf32>
      %cst = arith.constant dense<0xFF800000> : vector<8xf32>
      %19 = vector.multi_reduction <maximumf>, %18, %cst [1] : vector<8x128xf32> to vector<8xf32>
      %20 = vector.shape_cast %19 : vector<8xf32> to vector<8x1xf32>
      %21 = vector.broadcast %20 : vector<8x1xf32> to vector<8x128xf32>
      %22 = arith.subf %18, %21 : vector<8x128xf32>
      %23 = math.exp %22 : vector<8x128xf32>
      %cst_7 = arith.constant dense<0.000000e+00> : vector<8xf32>
      %24 = vector.multi_reduction <add>, %23, %cst_7 [1] : vector<8x128xf32> to vector<8xf32>
      %25 = vector.shape_cast %24 : vector<8xf32> to vector<8x1xf32>
      %26 = math.log %25 : vector<8x1xf32>
      %27 = tpu.iota {dimensions = array<i32: 1>} : vector<8x128xi32>
      %c0_8 = arith.constant 0 : index
      %c0_9 = arith.constant 0 : index
      %28 = vector.load %arg3[%c0_8, %c0_9] : memref<8x1xi32, #tpu.memory_space<vmem>>, vector<8x1xi32>
      %29 = vector.broadcast %28 : vector<8x1xi32> to vector<8x128xi32>
      %30 = arith.cmpi eq, %27, %29 : vector<8x128xi32>
      %cst_10 = arith.constant 0.000000e+00 : f32
      %31 = vector.broadcast %cst_10 : f32 to vector<8x128xf32>
      %32 = arith.select %30, %22, %31 : vector<8x128xi1>, vector<8x128xf32>
      %cst_11 = arith.constant dense<0.000000e+00> : vector<8xf32>
      %33 = vector.multi_reduction <add>, %32, %cst_11 [1] : vector<8x128xf32> to vector<8xf32>
      %34 = vector.shape_cast %33 : vector<8xf32> to vector<8x1xf32>
      %35 = arith.subf %26, %34 : vector<8x1xf32>
      %cst_12 = arith.constant 1.000000e+00 : f32
      %cst_13 = arith.constant 0.000000e+00 : f32
      %36 = vector.broadcast %cst_12 : f32 to vector<8x1xf32>
      %37 = vector.broadcast %cst_13 : f32 to vector<8x1xf32>
      %38 = arith.select %17, %36, %37 : vector<8x1xi1>, vector<8x1xf32>
      %39 = arith.mulf %38, %35 : vector<8x1xf32>
      %40 = vector.shape_cast %39 : vector<8x1xf32> to vector<1x8x1xf32>
      %cst_14 = arith.constant dense<0.000000e+00> : vector<1xf32>
      %41 = vector.multi_reduction <add>, %40, %cst_14 [1, 2] : vector<1x8x1xf32> to vector<1xf32>
      %42 = vector.shape_cast %41 : vector<1xf32> to vector<1x1x1xf32>
      %43 = vector.extract %42[0, 0, 0] : f32 from vector<1x1x1xf32>
      %44 = vector.shape_cast %38 : vector<8x1xf32> to vector<1x8x1xf32>
      %cst_15 = arith.constant dense<0.000000e+00> : vector<1xf32>
      %45 = vector.multi_reduction <add>, %44, %cst_15 [1, 2] : vector<1x8x1xf32> to vector<1xf32>
      %46 = vector.shape_cast %45 : vector<1xf32> to vector<1x1x1xf32>
      %47 = vector.extract %46[0, 0, 0] : f32 from vector<1x1x1xf32>
      %c0_16 = arith.constant 0 : index
      %c0_17 = arith.constant 0 : index
      %48 = vector.load %arg6[%c0_16, %c0_17] : memref<8x128xf32, #tpu.memory_space<vmem>>, vector<8x128xf32>
      %c0_i32_18 = arith.constant 0 : i32
      %49 = vector.broadcast %c0_i32_18 : i32 to vector<8x128xi32>
      %50 = arith.cmpi eq, %5, %49 : vector<8x128xi32>
      %c1_i32_19 = arith.constant 1 : i32
      %51 = vector.broadcast %c1_i32_19 : i32 to vector<8x128xi32>
      %52 = arith.cmpi eq, %5, %51 : vector<8x128xi32>
      %cst_20 = arith.constant 0.000000e+00 : f32
      %53 = vector.broadcast %47 : f32 to vector<8x128xf32>
      %54 = vector.broadcast %cst_20 : f32 to vector<8x128xf32>
      %55 = arith.select %52, %53, %54 : vector<8x128xi1>, vector<8x128xf32>
      %56 = vector.broadcast %43 : f32 to vector<8x128xf32>
      %57 = arith.select %50, %56, %55 : vector<8x128xi1>, vector<8x128xf32>
      %58 = arith.addf %48, %57 : vector<8x128xf32>
      %c0_21 = arith.constant 0 : index
      %c0_22 = arith.constant 0 : index
      %59 = vector.load %arg6[%c0_21, %c0_22] : memref<8x128xf32, #tpu.memory_space<vmem>>, vector<8x128xf32>
      tpu.vector_store %arg6[%c0_21, %c0_22], %58 {strides = array<i32>} : memref<8x128xf32, #tpu.memory_space<vmem>>, vector<8x128xf32>,
    } else {
    }
    %c1_i32_3 = arith.constant 1 : i32
    %13 = arith.cmpi slt, %1, %c1_i32_3 : i32
    %14 = arith.extui %13 : i1 to i32
    %c0_i32_4 = arith.constant 0 : i32
    %15 = arith.cmpi ne, %14, %c0_i32_4 : i32
    scf.if %15 {
      %c8_i32_5 = arith.constant 8 : i32
      %16 = vector.broadcast %c8_i32_5 : i32 to vector<8x1xi32>
      %17 = arith.cmpi slt, %9, %16 : vector<8x1xi32>
      %c0 = arith.constant 0 : index
      %c0_6 = arith.constant 0 : index
      %18 = vector.load %arg4[%c0, %c0_6] : memref<8x128xf32, #tpu.memory_space<vmem>>, vector<8x128xf32>
      %cst = arith.constant dense<0xFF800000> : vector<8xf32>
      %19 = vector.multi_reduction <maximumf>, %18, %cst [1] : vector<8x128xf32> to vector<8xf32>
      %20 = vector.shape_cast %19 : vector<8xf32> to vector<8x1xf32>
      %21 = vector.broadcast %20 : vector<8x1xf32> to vector<8x128xf32>
      %22 = arith.subf %18, %21 : vector<8x128xf32>
      %23 = math.exp %22 : vector<8x128xf32>
      %cst_7 = arith.constant dense<0.000000e+00> : vector<8xf32>
      %24 = vector.multi_reduction <add>, %23, %cst_7 [1] : vector<8x128xf32> to vector<8xf32>
      %25 = vector.shape_cast %24 : vector<8xf32> to vector<8x1xf32>
      %cst_8 = arith.constant 1.000000e+00 : f32
      %26 = vector.broadcast %cst_8 : f32 to vector<8x1xf32>
      %27 = arith.divf %26, %25 : vector<8x1xf32>
      %28 = vector.broadcast %27 : vector<8x1xf32> to vector<8x128xf32>
      %29 = arith.mulf %23, %28 : vector<8x128xf32>
      %c0_9 = arith.constant 0 : index
      %c0_10 = arith.constant 0 : index
      %30 = vector.load %arg5[%c0_9, %c0_10] : memref<8x128xf32, #tpu.memory_space<vmem>>, vector<8x128xf32>
      %cst_11 = arith.constant dense<0xFF800000> : vector<8xf32>
      %31 = vector.multi_reduction <maximumf>, %30, %cst_11 [1] : vector<8x128xf32> to vector<8xf32>
      %32 = vector.shape_cast %31 : vector<8xf32> to vector<8x1xf32>
      %33 = vector.broadcast %32 : vector<8x1xf32> to vector<8x128xf32>
      %34 = arith.subf %30, %33 : vector<8x128xf32>
      %35 = math.exp %34 : vector<8x128xf32>
      %cst_12 = arith.constant dense<0.000000e+00> : vector<8xf32>
      %36 = vector.multi_reduction <add>, %35, %cst_12 [1] : vector<8x128xf32> to vector<8xf32>
      %37 = vector.shape_cast %36 : vector<8xf32> to vector<8x1xf32>
      %38 = arith.subf %22, %34 : vector<8x128xf32>
      %39 = arith.mulf %29, %38 : vector<8x128xf32>
      %cst_13 = arith.constant dense<0.000000e+00> : vector<8xf32>
      %40 = vector.multi_reduction <add>, %39, %cst_13 [1] : vector<8x128xf32> to vector<8xf32>
      %41 = vector.shape_cast %40 : vector<8xf32> to vector<8x1xf32>
      %42 = math.log %37 : vector<8x1xf32>
      %43 = arith.addf %41, %42 : vector<8x1xf32>
      %44 = math.log %25 : vector<8x1xf32>
      %45 = arith.subf %43, %44 : vector<8x1xf32>
      %cst_14 = arith.constant 0.000000e+00 : f32
      %46 = vector.broadcast %cst_14 : f32 to vector<8x1xf32>
      %47 = arith.select %17, %45, %46 : vector<8x1xi1>, vector<8x1xf32>
      %48 = vector.shape_cast %47 : vector<8x1xf32> to vector<1x8x1xf32>
      %cst_15 = arith.constant dense<0.000000e+00> : vector<1xf32>
      %49 = vector.multi_reduction <add>, %48, %cst_15 [1, 2] : vector<1x8x1xf32> to vector<1xf32>
      %50 = vector.shape_cast %49 : vector<1xf32> to vector<1x1x1xf32>
      %51 = vector.extract %50[0, 0, 0] : f32 from vector<1x1x1xf32>
      %c0_16 = arith.constant 0 : index
      %c0_17 = arith.constant 0 : index
      %52 = vector.load %arg6[%c0_16, %c0_17] : memref<8x128xf32, #tpu.memory_space<vmem>>, vector<8x128xf32>
      %c2_i32 = arith.constant 2 : i32
      %53 = vector.broadcast %c2_i32 : i32 to vector<8x128xi32>
      %54 = arith.cmpi eq, %5, %53 : vector<8x128xi32>
      %cst_18 = arith.constant 0.000000e+00 : f32
      %55 = vector.broadcast %51 : f32 to vector<8x128xf32>
      %56 = vector.broadcast %cst_18 : f32 to vector<8x128xf32>
      %57 = arith.select %54, %55, %56 : vector<8x128xi1>, vector<8x128xf32>
      %58 = arith.addf %52, %57 : vector<8x128xf32>
      %c0_19 = arith.constant 0 : index
      %c0_20 = arith.constant 0 : index
      %59 = vector.load %arg6[%c0_19, %c0_20] : memref<8x128xf32, #tpu.memory_space<vmem>>, vector<8x128xf32>
      tpu.vector_store %arg6[%c0_19, %c0_20], %58 {strides = array<i32>} : memref<8x128xf32, #tpu.memory_space<vmem>>, vector<8x128xf32>,
    } else {
    }
    return
  }
  func.func @transform_0(%arg0: i32, %arg1: i32) -> (i32, i32) {
    %c1_i32 = arith.constant 1 : i32
    %0 = arith.muli %arg0, %c1_i32 : i32
    %1 = arith.addi %0, %arg1 : i32
    %c0_i32 = arith.constant 0 : i32
    %2 = arith.minsi %1, %c0_i32 : i32
    %c0_i32_0 = arith.constant 0 : i32
    %3 = arith.addi %c0_i32_0, %2 : i32
    %c0_i32_1 = arith.constant 0 : i32
    %c0_i32_2 = arith.constant 0 : i32
    return %3, %c0_i32_1 : i32, i32
  }
  func.func @transform_1(%arg0: i32, %arg1: i32) -> (i32, i32) {
    %c1_i32 = arith.constant 1 : i32
    %0 = arith.muli %arg0, %c1_i32 : i32
    %1 = arith.addi %0, %arg1 : i32
    %c0_i32 = arith.constant 0 : i32
    %2 = arith.minsi %1, %c0_i32 : i32
    %c0_i32_0 = arith.constant 0 : i32
    %c0_i32_1 = arith.constant 0 : i32
    return %2, %c0_i32_0 : i32, i32
  }
  func.func @transform_2(%arg0: i32, %arg1: i32) -> (i32, i32) {
    %c1_i32 = arith.constant 1 : i32
    %0 = arith.muli %arg0, %c1_i32 : i32
    %1 = arith.addi %0, %arg1 : i32
    %c0_i32 = arith.constant 0 : i32
    %2 = arith.minsi %1, %c0_i32 : i32
    %c1_i32_0 = arith.constant 1 : i32
    %3 = arith.addi %c1_i32_0, %2 : i32
    %c0_i32_1 = arith.constant 0 : i32
    %c0_i32_2 = arith.constant 0 : i32
    return %3, %c0_i32_1 : i32, i32
  }
  func.func @transform_3(%arg0: i32, %arg1: i32) -> (i32, i32) {
    %c1_i32 = arith.constant 1 : i32
    %0 = arith.muli %arg0, %c1_i32 : i32
    %1 = arith.addi %0, %arg1 : i32
    %c0_i32 = arith.constant 0 : i32
    %2 = arith.minsi %1, %c0_i32 : i32
    %c2_i32 = arith.constant 2 : i32
    %3 = arith.addi %c2_i32, %2 : i32
    %c0_i32_0 = arith.constant 0 : i32
    %c0_i32_1 = arith.constant 0 : i32
    return %3, %c0_i32_0 : i32, i32
  }
  func.func @transform_4(%arg0: i32, %arg1: i32) -> (i32, i32) {
    %c0_i32 = arith.constant 0 : i32
    %c0_i32_0 = arith.constant 0 : i32
    return %arg0, %c0_i32 : i32, i32
  }
}

</mosaic_0001>

<llo_original>
// kernel: tpu_custom_call.1
$region0: #{tpu_custom_call.1}
  #allocation0 [shape = 'u32[]', space=smem, size = 0x4, offset = 0x4, fixed_abs, tag = 'smem constant byte address 0x4 - core index']
  #allocation1 [shape = 'u32[72,128]{1,0:T(1,128)}', space=vmem, size = 0x9000, scoped, tag = 'internal scratch']
  %s0 = inlined_call_operand.hbm [shape: f32[24,128], index: 0, kind: input, shape index: {}]
  %s1 = inlined_call_operand.vmem [shape: s32[8,1], index: 1, kind: input, shape index: {}]
  %s2 = inlined_call_operand.hbm [shape: f32[24,128], index: 2, kind: input, shape index: {}]
  %s3 = inlined_call_operand.hbm [shape: f32[24,128], index: 3, kind: input, shape index: {}]
  %s4 = inlined_call_operand.hbm [shape: f32[8,128], index: 4, kind: output, shape index: {}]
  %s5 = sld [smem:[#allocation0]]
  $region46: #{tpu_custom_call.1} parent=0
    _
  %s7 = ssub.s32 1, %s5
  %s8 = scalar_select 0, %s7, %s5
  $region1: #{tpu_custom_call.1} parent=0
    #allocation2 [shape = 'u8[4096]{0}', space=vmem, size = 0x1000, scoped, tag = 'input window, operand 0, single buffered']
    #allocation3 [shape = 's32[1]{0}', space=sflag, size = 0x4, scoped, tag = 'scoped memory for tpu_custom_call.1']
    #allocation4 [shape = 's32[1]{0}', space=sflag, size = 0x4, scoped, tag = 'scoped memory for tpu_custom_call.1']
    #allocation5 [shape = 'u8[4096]{0}', space=vmem, size = 0x1000, scoped, tag = 'input window, operand 2, single buffered']
    #allocation6 [shape = 's32[1]{0}', space=sflag, size = 0x4, scoped, tag = 'scoped memory for tpu_custom_call.1']
    #allocation7 [shape = 'u8[4096]{0}', space=vmem, size = 0x1000, scoped, tag = 'input window, operand 3, single buffered']
    #allocation8 [shape = 'u8[4096]{0}', space=vmem, size = 0x1000, scoped, tag = 'output window, operand 0, single buffered']
    %9 = vsyncpa [#allocation3], 0
    %10 = vsyncpa [#allocation6], 0
    %11 = vsyncpa [#allocation4], 0
    // Predicated region
    $region2: #{tpu_custom_call.1} parent=1 // pred_check
      _
    $region3: #{tpu_custom_call.1} parent=1 // pred_check_branch
      %13 = sbr.rel (0) target = $region5
    $region4: #{tpu_custom_call.1} parent=1 // pred_region
      %s14 = sadd.s32 0, 0
      %p15 = scmp.lt.s32.totalorder %s14, 0
      %s16 = scalar_select %p15, %s14, 0
      %18 = vsyncadd [#allocation3], 0
      %s19 = smul.addr %s16, 8
      %s20 = scalar_lea.hbm %s0, %s19
      %s22 = sshll.u32 %s20, 4
      %s23 = int_to_ptr.hbm [resolvable:$true] %s22
      %s24 = sshll.u32 [#allocation2], 4
      %s25 = int_to_ptr.vmem [resolvable:$true] %s24
      %27 = dma.hbm_to_vmem [thread:$0]  %s23, 128, %s25, [#allocation3]
    $region5: #{tpu_custom_call.1} parent=1 // pred_fallthru
      _
    // Predicated region
    $region6: #{tpu_custom_call.1} parent=1 // pred_check
      _
    $region7: #{tpu_custom_call.1} parent=1 // pred_check_branch
      %29 = sbr.rel (0) target = $region9
    $region8: #{tpu_custom_call.1} parent=1 // pred_region
      %s30 = sadd.s32 0, 0
      %p31 = scmp.lt.s32.totalorder %s30, 0
      %s32 = scalar_select %p31, %s30, 0
      %p33 = scmp.lt.s32.totalorder %s32, 0
      %s34 = scalar_select %p33, %s32, 0
      %s35 = smul.addr %s34, 8
      %s36 = scalar_lea.vmem %s1, %s35
      %s37 = sadd.s32 0, 0
      %p38 = scmp.lt.s32.totalorder %s37, 0
      %s39 = scalar_select %p38, %s37, 0
    $region9: #{tpu_custom_call.1} parent=1 // pred_fallthru
      _
    // Predicated region
    $region10: #{tpu_custom_call.1} parent=1 // pred_check
      _
    $region11: #{tpu_custom_call.1} parent=1 // pred_check_branch
      %41 = sbr.rel (0) target = $region13
    $region12: #{tpu_custom_call.1} parent=1 // pred_region
      %s42 = sadd.s32 0, 0
      %p43 = scmp.lt.s32.totalorder %s42, 0
      %s44 = scalar_select %p43, %s42, 0
      %s45 = sadd.s32 %s44, 1
      %47 = vsyncadd [#allocation6], 0
      %s48 = smul.addr %s45, 8
      %s49 = scalar_lea.hbm %s2, %s48
      %s51 = sshll.u32 %s49, 4
      %s52 = int_to_ptr.hbm [resolvable:$true] %s51
      %s53 = sshll.u32 [#allocation5], 4
      %s54 = int_to_ptr.vmem [resolvable:$true] %s53
      %56 = dma.hbm_to_vmem [thread:$0]  %s52, 128, %s54, [#allocation6]
    $region13: #{tpu_custom_call.1} parent=1 // pred_fallthru
      _
    // Predicated region
    $region14: #{tpu_custom_call.1} parent=1 // pred_check
      _
    $region15: #{tpu_custom_call.1} parent=1 // pred_check_branch
      %58 = sbr.rel (0) target = $region17
    $region16: #{tpu_custom_call.1} parent=1 // pred_region
      %s59 = sadd.s32 0, 0
      %p60 = scmp.lt.s32.totalorder %s59, 0
      %s61 = scalar_select %p60, %s59, 0
      %s62 = sadd.s32 %s61, 2
      %64 = vsyncadd [#allocation6], 0
      %s65 = smul.addr %s62, 8
      %s66 = scalar_lea.hbm %s3, %s65
      %s68 = sshll.u32 %s66, 4
      %s69 = int_to_ptr.hbm [resolvable:$true] %s68
      %s70 = sshll.u32 [#allocation7], 4
      %s71 = int_to_ptr.vmem [resolvable:$true] %s70
      %73 = dma.hbm_to_vmem [thread:$0]  %s69, 128, %s71, [#allocation6]
    $region17: #{tpu_custom_call.1} parent=1 // pred_fallthru
      _
    // Predicated region
    $region18: #{tpu_custom_call.1} parent=1 // pred_check
      _
    $region19: #{tpu_custom_call.1} parent=1 // pred_check_branch
      %75 = sbr.rel (0) target = $region21
    $region20: #{tpu_custom_call.1} parent=1 // pred_region
      %77 = dma.done [#allocation3], 128
    $region21: #{tpu_custom_call.1} parent=1 // pred_fallthru
      _
    // Predicated region
    $region22: #{tpu_custom_call.1} parent=1 // pred_check
      _
    $region23: #{tpu_custom_call.1} parent=1 // pred_check_branch
      %79 = sbr.rel (0) target = $region25
    $region24: #{tpu_custom_call.1} parent=1 // pred_region
      %81 = dma.done [#allocation6], 128
    $region25: #{tpu_custom_call.1} parent=1 // pred_fallthru
      _
    // Predicated region
    $region26: #{tpu_custom_call.1} parent=1 // pred_check
      _
    $region27: #{tpu_custom_call.1} parent=1 // pred_check_branch
      %83 = sbr.rel (0) target = $region29
    $region28: #{tpu_custom_call.1} parent=1 // pred_region
      %85 = dma.done [#allocation6], 128
    $region29: #{tpu_custom_call.1} parent=1 // pred_fallthru
      _
    %s86 = sadd.s32 0, 0
    %p87 = scmp.lt.s32.totalorder %s86, 0
    %s88 = scalar_select %p87, %s86, 0
    %p89 = scmp.lt.s32.totalorder %s88, 0
    %s90 = scalar_select %p89, %s88, 0
    %s91 = smul.addr %s90, 8
    %s92 = scalar_lea.vmem %s1, %s91
    %s93 = sadd.s32 0, 0
    %p94 = scmp.lt.s32.totalorder %s93, 0
    %s95 = scalar_select %p94, %s93, 0
    %s96 = sadd.s32 0, 0
    %p97 = scmp.lt.s32.totalorder %s96, 0
    %s98 = scalar_select %p97, %s96, 0
    %p99 = scmp.lt.s32.totalorder %s98, 0
    %s100 = scalar_select %p99, %s98, 0
    %s101 = smul.addr %s100, 8
    %s102 = scalar_lea.vmem %s1, %s101
    %s103 = sadd.s32 0, 0
    %p104 = scmp.lt.s32.totalorder %s103, 0
    %s105 = scalar_select %p104, %s103, 0
    %s106 = sadd.s32 0, 0
    %p107 = scmp.lt.s32.totalorder %s106, 0
    %s108 = scalar_select %p107, %s106, 0
    %s109 = sadd.s32 %s108, 1
    %s110 = sadd.s32 0, 0
    %p111 = scmp.lt.s32.totalorder %s110, 0
    %s112 = scalar_select %p111, %s110, 0
    %s113 = sadd.s32 %s112, 2
    %s114 = sadd.s32 0, 0
    %p115 = scmp.eq.s32.totalorder 0, 0
    // Predicated region
    $region30: #{tpu_custom_call.1} parent=1 // pred_check
      %p116 = pneg %p115
    $region31: #{tpu_custom_call.1} parent=1 // pred_check_branch
      %118 = sbr.rel (%p116) target = $region33
    $region32: #{tpu_custom_call.1} parent=1 // pred_region
      %119 = vst [vmem:[#allocation8] sm:$0xff] 0.0
    $region33: #{tpu_custom_call.1} parent=1 // pred_fallthru
      _
    %v120 = vlaneseq
    %v121 = vand.u32 %v120, 127
    %v122 = vlaneseq
    %v123 = vshrl.u32 %v122, 7
    %s124 = smul.u32 %s114, 8
    %v125 = vstv %s124
    %v126 = vadd.s32 %v123, %v125
    %p127 = scmp.lt.s32.totalorder %s114, 1
    // Predicated region
    $region34: #{tpu_custom_call.1} parent=1 // pred_check
      %p128 = pneg %p127
    $region35: #{tpu_custom_call.1} parent=1 // pred_check_branch
      %130 = sbr.rel (%p128) target = $region37
    $region36: #{tpu_custom_call.1} parent=1 // pred_region
      %vm131 = vcmp.lt.s32.totalorder %v126, 8
      %v132 = vld [vmem:[#allocation2] sm:$0xff]
      %133 = vmax.xlane.f32.xlu0 %v132
      %v134 = vpop.xlane.xlu0 %133
      %v135 = vsub.f32 %v132, %v134
      %v136 = vmul.f32 %v135, 1.442695
      %v137 = vpow.pop %v136
      %138 = vadd.xlane.f32.xlu0 %v137
      %v139 = vpop.xlane.xlu0 %138
      %v140 = vlog2.pop %v139
      %v141 = vmul.f32 %v140, 0.6931472
      %v142 = vld [vmem:[%s102] sm:$0xff]
      %143 = vset.pattern.permute.xlu0 0
      %144 = vperm.xlu0 %143, %v142
      %v145 = vpop.permute.xlu0 %144
      %vm146 = vcmp.eq.s32.totalorder %v121, %v145
      %v147 = vsel %vm146, %v135, 0.0
      %148 = vadd.xlane.f32.xlu0 %v147
      %v149 = vpop.xlane.xlu0 %148
      %v150 = vsub.f32 %v141, %v149
      %v151 = vsel %vm131, 1.0, 0.0
      %v152 = vmul.f32 %v151, %v150
      %vm153 = vcmask 7168
      %v154 = vsel %vm153, %v152, 0.0
      %155 = vadd.xlane.f32.xlu0 %v154
      %v156 = vpop.xlane.xlu0 %155
      %v157 = vrot.slane %v156, 4
      %v158 = vadd.f32 %v156, %v157
      %v159 = vrot.slane %v158, 2
      %v160 = vadd.f32 %v158, %v159
      %v161 = vrot.slane %v160, 1
      %v162 = vadd.f32 %v160, %v161
      %s163 = vtos %v162
      %v164 = vsel %vm153, %v151, 0.0
      %165 = vadd.xlane.f32.xlu0 %v164
      %v166 = vpop.xlane.xlu0 %165
      %v167 = vrot.slane %v166, 4
      %v168 = vadd.f32 %v166, %v167
      %v169 = vrot.slane %v168, 2
      %v170 = vadd.f32 %v168, %v169
      %v171 = vrot.slane %v170, 1
      %v172 = vadd.f32 %v170, %v171
      %s173 = vtos %v172
      %v174 = vld [vmem:[#allocation8] sm:$0xff]
      %vm175 = vcmp.eq.s32.totalorder %v121, 0
      %vm176 = vcmp.eq.s32.totalorder %v121, 1
      %v177 = vstv %s173
      %v178 = vsel %vm176, %v177, 0.0
      %v179 = vstv %s163
      %v180 = vsel %vm175, %v179, %v178
      %v181 = vadd.f32 %v174, %v180
      %182 = vst [vmem:[#allocation8] sm:$0xff] %v181
      %v183 = vld [vmem:[#allocation5] sm:$0xff]
      %184 = vmax.xlane.f32.xlu0 %v183
      %v185 = vpop.xlane.xlu0 %184
      %v186 = vsub.f32 %v183, %v185
      %v187 = vmul.f32 %v186, 1.442695
      %v188 = vpow.pop %v187
      %189 = vadd.xlane.f32.xlu0 %v188
      %v190 = vpop.xlane.xlu0 %189
      %v191 = vrcp.pop %v190
      %v192 = vmul.f32 %v190, %v191
      %v193 = vsub.f32 1.0, %v192
      %v194 = vmul.f32 %v191, %v193
      %v195 = vadd.f32 %v191, %v194
      %vm196 = vweird.f32 %v190
      %vm197 = vweird.f32 %v191
      %vm198 = vmor %vm196, %vm197
      %v199 = vsel %vm198, %v191, %v195
      %v200 = vand.u32 2147483647, %v190
      %vm201 = vcmp.eq.f32.partialorder %v200, 8.507059e+37
      %v202 = vand.u32 %v190, 2147483648
      %v203 = vor.u32 1.1754944e-38, %v202
      %v204 = vsel %vm201, %v203, %v199
      %v205 = vmul.f32 1.0, %v204
      %v206 = vmul.f32 %v188, %v205
      %v207 = vld [vmem:[#allocation7] sm:$0xff]
      %208 = vmax.xlane.f32.xlu0 %v207
      %v209 = vpop.xlane.xlu0 %208
      %v210 = vsub.f32 %v207, %v209
      %v211 = vmul.f32 %v210, 1.442695
      %v212 = vpow.pop %v211
      %213 = vadd.xlane.f32.xlu0 %v212
      %v214 = vpop.xlane.xlu0 %213
      %v215 = vsub.f32 %v186, %v210
      %v216 = vmul.f32 %v206, %v215
      %217 = vadd.xlane.f32.xlu0 %v216
      %v218 = vpop.xlane.xlu0 %217
      %v219 = vlog2.pop %v214
      %v220 = vmul.f32 %v219, 0.6931472
      %v221 = vadd.f32 %v218, %v220
      %v222 = vlog2.pop %v190
      %v223 = vmul.f32 %v222, 0.6931472
      %v224 = vsub.f32 %v221, %v223
      %v225 = vsel %vm131, %v224, 0.0
      %v226 = vsel %vm153, %v225, 0.0
      %227 = vadd.xlane.f32.xlu0 %v226
      %v228 = vpop.xlane.xlu0 %227
      %v229 = vrot.slane %v228, 4
      %v230 = vadd.f32 %v228, %v229
      %v231 = vrot.slane %v230, 2
      %v232 = vadd.f32 %v230, %v231
      %v233 = vrot.slane %v232, 1
      %v234 = vadd.f32 %v232, %v233
      %s235 = vtos %v234
      %v236 = vld [vmem:[#allocation8] sm:$0xff]
      %vm237 = vcmp.eq.s32.totalorder %v121, 2
      %v238 = vstv %s235
      %v239 = vsel %vm237, %v238, 0.0
      %v240 = vadd.f32 %v236, %v239
      %241 = vst [vmem:[#allocation8] sm:$0xff] %v240
    $region37: #{tpu_custom_call.1} parent=1 // pred_fallthru
      _
    // Predicated region
    $region38: #{tpu_custom_call.1} parent=1 // pred_check
      _
    $region39: #{tpu_custom_call.1} parent=1 // pred_check_branch
      %243 = sbr.rel (0) target = $region41
    $region40: #{tpu_custom_call.1} parent=1 // pred_region
      %245 = vsyncadd [#allocation4], 0
      %s247 = sshll.u32 [#allocation8], 4
      %s248 = int_to_ptr.vmem [resolvable:$true] %s247
      %s249 = sshll.u32 %s4, 4
      %s250 = int_to_ptr.hbm [resolvable:$true] %s249
      %252 = dma.vmem_to_hbm [thread:$0]  %s248, 128, %s250, [#allocation4]
    $region41: #{tpu_custom_call.1} parent=1 // pred_fallthru
      _
    // Predicated region
    $region42: #{tpu_custom_call.1} parent=1 // pred_check
      _
    $region43: #{tpu_custom_call.1} parent=1 // pred_check_branch
      %254 = sbr.rel (0) target = $region45
    $region44: #{tpu_custom_call.1} parent=1 // pred_region
      %256 = dma.done [#allocation4], 128
    $region45: #{tpu_custom_call.1} parent=1 // pred_fallthru
      _
    %257 = vsyncpa [#allocation3], 1
    %258 = vsyncpa [#allocation6], 1
    %259 = vsyncpa [#allocation4], 1

</llo_original>
